<compile_context>
chip_gen: v7x
topology: tpu7x:2x2x1
jax: 0.10.0
libtpu: 0.0.40
codegen_flags: <defaults>
</compile_context>

<pallas_src>
import functools

import jax
import jax.numpy as jnp
from jax.experimental import pallas as pl
from jax.experimental.pallas import tpu as pltpu

MIN_SIZE = 1   # from RemoveInvalidBoxes.__init__(min_size=1)
BLOCK = 128    # lane width per scan block; 256 would match v6e/v7x MXU tiles,
               # 128 is optimal on v5e and keeps divisibility trivial.


def _compact_kernel(boxes_ref, dest_ref, count_ref, *, min_size, n):
    """Lane-dense stable-compaction index kernel.

    boxes_ref: (4, NB, BLOCK) f32  XYXY boxes, transposed+padded, one box/lane.
    dest_ref:  (NB, BLOCK)    int32 destination slot per box (full permutation).
    count_ref: (1, 1)         int32 number of valid boxes.
    """
    nb = boxes_ref.shape[1]

    x1 = boxes_ref[0]                                    # (NB, BLOCK)
    y1 = boxes_ref[1]
    x2 = boxes_ref[2]
    y2 = boxes_ref[3]
    area = (x2 - x1) * (y2 - y1)

    blk = jax.lax.broadcasted_iota(jnp.int32, (nb, BLOCK), 0)
    lane = jax.lax.broadcasted_iota(jnp.int32, (nb, BLOCK), 1)
    idx = blk * BLOCK + lane                             # global box index

    # Strict '>' exactly as in torch; `idx < n` keeps padded lanes invalid
    # even if min_size <= 0 or degenerate boxes have negative deltas.
    valid = jnp.logical_and(area > jnp.float32(min_size), idx < n)
    mask = valid.astype(jnp.float32)                     # exact 0/1, (NB, BLOCK)

    # Within-block exclusive prefix sum on the MXU:
    #   excl[b, j] = sum_i mask[b, i] * [i < j]
    r = jax.lax.broadcasted_iota(jnp.int32, (BLOCK, BLOCK), 0)
    c = jax.lax.broadcasted_iota(jnp.int32, (BLOCK, BLOCK), 1)
    upper_strict = (r < c).astype(jnp.float32)           # (BLOCK, BLOCK), 0/1
    excl = jnp.dot(mask, upper_strict, preferred_element_type=jnp.float32)

    # Per-block totals + tiny cross-block exclusive scan (NB is small).
    bsum = jnp.sum(mask, axis=1, keepdims=True)          # (NB, 1)
    if nb > 1:
        rb = jax.lax.broadcasted_iota(jnp.int32, (nb, nb), 0)
        cb = jax.lax.broadcasted_iota(jnp.int32, (nb, nb), 1)
        lower_strict = (cb < rb).astype(jnp.float32)
        boff = jnp.dot(lower_strict, bsum, preferred_element_type=jnp.float32)
    else:
        boff = jnp.zeros_like(bsum)

    cv = excl + boff                                     # valid boxes strictly before idx
    cnt = jnp.sum(bsum, axis=0, keepdims=True)           # (1, 1) total valid count

    idx_f = idx.astype(jnp.float32)
    ci = idx_f - cv                                      # invalid boxes strictly before idx
    # Stable compaction: valid -> front slot cv, invalid/pad -> back slot cnt + ci.
    dest = jnp.where(valid, cv, cnt + ci)

    dest_ref[...] = dest.astype(jnp.int32)               # lane-dense int32 slab
    count_ref[...] = cnt.astype(jnp.int32)


@functools.partial(jax.jit, static_argnames=("min_size",))
def remove_invalid_boxes(img, boxes, labels, *, min_size=MIN_SIZE):
    """JAX/Pallas equivalent of RemoveInvalidBoxes.forward.

    img:    (C, H, W) float32 (passed through untouched)
    boxes:  (N, 4)    float32, XYXY
    labels: (N,)      int32

    Returns (img, sanitized_boxes (N,4), sanitized_labels (N,), count).
    """
    n = boxes.shape[0]
    h, w = img.shape[1], img.shape[2]
    nb = max(1, -(-n // BLOCK))
    n_pad = nb * BLOCK

    # Lane-dense layout: one box per lane, coordinate index on the leading axis.
    boxes_t = boxes.astype(jnp.float32).T                # (4, n)
    if n_pad > n:
        boxes_t = jnp.pad(boxes_t, ((0, 0), (0, n_pad - n)))
    boxes_t = boxes_t.reshape(4, nb, BLOCK)

    kernel = functools.partial(_compact_kernel, min_size=min_size, n=n)
    dest2d, count_arr = pl.pallas_call(
        kernel,
        out_shape=(
            jax.ShapeDtypeStruct((nb, BLOCK), jnp.int32),   # destination slots
            jax.ShapeDtypeStruct((1, 1), jnp.int32),        # valid count
        ),
        grid=(1,),
        in_specs=[pl.BlockSpec((4, nb, BLOCK), lambda i: (0, 0, 0))],
        out_specs=(
            pl.BlockSpec((nb, BLOCK), lambda i: (0, 0)),
            pl.BlockSpec((1, 1), lambda i: (0, 0)),
        ),
        compiler_params=pltpu.CompilerParams(dimension_semantics=("arbitrary",)),
    )(boxes_t)

    count = count_arr[0, 0]
    dest = dest2d.reshape(n_pad)[:n]                     # permutation of 0..n-1

    # Single stable-compaction scatter (valid boxes to the front, in order).
    sanitized_boxes = jnp.zeros_like(boxes).at[dest].set(boxes)
    sanitized_labels = jnp.zeros_like(labels).at[dest].set(labels)

    # Fallback when nothing survives: [0, 0, img.shape[1], img.shape[2]] / -1,
    # exactly as the torch reference (shape[1]=H, shape[2]=W for CHW).
    empty = count == 0
    fallback_box = jnp.array([0.0, 0.0, float(h), float(w)], dtype=sanitized_boxes.dtype)
    box0 = jnp.where(empty, fallback_box, sanitized_boxes[0])
    lab0 = jnp.where(empty, jnp.asarray(-1, sanitized_labels.dtype), sanitized_labels[0])
    sanitized_boxes = sanitized_boxes.at[0].set(box0)
    sanitized_labels = sanitized_labels.at[0].set(lab0)
    count = jnp.maximum(count, 1)

    # TODO(synk): torch returns variable-length Python lists; here results are
    # padded to N with `count` marking the valid prefix (invalid boxes stably
    # compacted to the back).
    return img, sanitized_boxes, sanitized_labels, count


if __name__ == "__main__":
    key = jax.random.PRNGKey(0)
    k1, k2, k3 = jax.random.split(key, 3)

    C, H, W, N = 3, 16, 16, 8
    img = jax.random.normal(k1, (C, H, W), dtype=jnp.float32)

    # Build N boxes; make a few degenerate / tiny so they get filtered.
    x1y1 = jax.random.uniform(k2, (N, 2), minval=0.0, maxval=8.0)
    wh = jax.random.uniform(k3, (N, 2), minval=0.0, maxval=8.0)
    wh = wh.at[0].set(jnp.array([0.5, 0.5]))   # area 0.25 -> invalid
    wh = wh.at[3].set(jnp.array([1.0, 0.0]))   # area 0    -> invalid
    boxes = jnp.concatenate([x1y1, x1y1 + wh], axis=1).astype(jnp.float32)
    labels = jnp.arange(N, dtype=jnp.int32)

    def ref_keep_indices(bxs, min_size):
        areas = (bxs[:, 2] - bxs[:, 0]) * (bxs[:, 3] - bxs[:, 1])
        return [i for i in range(bxs.shape[0]) if float(areas[i]) > min_size]

    out_img, out_boxes, out_labels, out_count = remove_invalid_boxes(
        img, boxes, labels, min_size=MIN_SIZE
    )
    jax.block_until_ready((out_img, out_boxes, out_labels, out_count))

    keep = ref_keep_indices(boxes, MIN_SIZE)
    assert int(out_count) == max(len(keep), 1), (int(out_count), len(keep))
    if keep:
        ridx = jnp.array(keep, dtype=jnp.int32)
        assert bool(jnp.allclose(out_boxes[: len(keep)], boxes[ridx]))
        assert bool(jnp.array_equal(out_labels[: len(keep)], labels[ridx]))
    assert bool(jnp.allclose(out_img, img))

    # Cross-block case (N > 128 -> multiple 128-lane scan blocks).
    N2 = 300
    kb1, kb2 = jax.random.split(k3)
    xy2 = jax.random.uniform(kb1, (N2, 2), minval=0.0, maxval=8.0)
    wh2 = jax.random.uniform(kb2, (N2, 2), minval=0.0, maxval=2.0)  # mix of valid/invalid
    boxes2 = jnp.concatenate([xy2, xy2 + wh2], axis=1).astype(jnp.float32)
    labels2 = jnp.arange(N2, dtype=jnp.int32)
    _, out_b2, out_l2, out_c2 = remove_invalid_boxes(img, boxes2, labels2)
    jax.block_until_ready((out_b2, out_l2, out_c2))
    keep2 = ref_keep_indices(boxes2, MIN_SIZE)
    assert int(out_c2) == max(len(keep2), 1), (int(out_c2), len(keep2))
    if keep2:
        r2 = jnp.array(keep2, dtype=jnp.int32)
        assert bool(jnp.allclose(out_b2[: len(keep2)], boxes2[r2]))
        assert bool(jnp.array_equal(out_l2[: len(keep2)], labels2[r2]))

    # Empty case: all boxes degenerate -> fallback [0, 0, H, W], label -1, count 1.
    deg = jnp.concatenate([x1y1, x1y1], axis=1).astype(jnp.float32)
    _, fb_boxes, fb_labels, fb_count = remove_invalid_boxes(img, deg, labels)
    jax.block_until_ready((fb_boxes, fb_labels, fb_count))
    assert int(fb_count) == 1
    assert bool(jnp.allclose(fb_boxes[0], jnp.array([0.0, 0.0, float(H), float(W)])))
    assert int(fb_labels[0]) == -1

    print("KERNEL_OK")
</pallas_src>

<mosaic_0001>
module attributes {stable_mosaic.version = 11 : i64} {
  func.func @_compact_kernel(%arg0: i32, %arg1: memref<4x1x128xf32, #tpu.memory_space<vmem>>, %arg2: memref<1x128xi32, #tpu.memory_space<vmem>>, %arg3: memref<1x1xi32, #tpu.memory_space<vmem>>) attributes {dimension_semantics = [#tpu.dimension_semantics<arbitrary>], iteration_bounds = array<i64: 1>, scalar_prefetch = 0 : i64, scratch_operands = 0 : i64, tpu.core_type = #tpu.core_type<tc>, window_params = [{pipeline_mode = #tpu.pipeline_mode<synchronous>, transform_indices = @transform_0, window_bounds = array<i64: 4, 1, 128>}, {pipeline_mode = #tpu.pipeline_mode<synchronous>, transform_indices = @transform_1, window_bounds = array<i64: 1, 128>}, {pipeline_mode = #tpu.pipeline_mode<synchronous>, transform_indices = @transform_2, window_bounds = array<i64: 1, 1>}]} {
    %c0 = arith.constant 0 : index
    %c0_0 = arith.constant 0 : index
    %c0_1 = arith.constant 0 : index
    %0 = vector.load %arg1[%c0, %c0_0, %c0_1] : memref<4x1x128xf32, #tpu.memory_space<vmem>>, vector<1x1x128xf32>
    %1 = vector.shape_cast %0 : vector<1x1x128xf32> to vector<1x128xf32>
    %c1 = arith.constant 1 : index
    %c0_2 = arith.constant 0 : index
    %c0_3 = arith.constant 0 : index
    %2 = vector.load %arg1[%c1, %c0_2, %c0_3] : memref<4x1x128xf32, #tpu.memory_space<vmem>>, vector<1x1x128xf32>
    %3 = vector.shape_cast %2 : vector<1x1x128xf32> to vector<1x128xf32>
    %c2 = arith.constant 2 : index
    %c0_4 = arith.constant 0 : index
    %c0_5 = arith.constant 0 : index
    %4 = vector.load %arg1[%c2, %c0_4, %c0_5] : memref<4x1x128xf32, #tpu.memory_space<vmem>>, vector<1x1x128xf32>
    %5 = vector.shape_cast %4 : vector<1x1x128xf32> to vector<1x128xf32>
    %c3 = arith.constant 3 : index
    %c0_6 = arith.constant 0 : index
    %c0_7 = arith.constant 0 : index
    %6 = vector.load %arg1[%c3, %c0_6, %c0_7] : memref<4x1x128xf32, #tpu.memory_space<vmem>>, vector<1x1x128xf32>
    %7 = vector.shape_cast %6 : vector<1x1x128xf32> to vector<1x128xf32>
    %8 = arith.subf %5, %1 : vector<1x128xf32>
    %9 = arith.subf %7, %3 : vector<1x128xf32>
    %10 = arith.mulf %8, %9 : vector<1x128xf32>
    %11 = tpu.iota {dimensions = array<i32: 0>} : vector<1x128xi32>
    %12 = tpu.iota {dimensions = array<i32: 1>} : vector<1x128xi32>
    %c128_i32 = arith.constant 128 : i32
    %13 = vector.broadcast %c128_i32 : i32 to vector<1x128xi32>
    %14 = arith.muli %11, %13 : vector<1x128xi32>
    %15 = arith.addi %14, %12 : vector<1x128xi32>
    %cst = arith.constant 1.000000e+00 : f32
    %16 = vector.broadcast %cst : f32 to vector<1x128xf32>
    %17 = arith.cmpf ogt, %10, %16 : vector<1x128xf32>
    %c8_i32 = arith.constant 8 : i32
    %18 = vector.broadcast %c8_i32 : i32 to vector<1x128xi32>
    %19 = arith.cmpi slt, %15, %18 : vector<1x128xi32>
    %20 = arith.andi %17, %19 : vector<1x128xi1>
    %21 = arith.extui %20 : vector<1x128xi1> to vector<1x128xi32>
    %22 = arith.sitofp %21 : vector<1x128xi32> to vector<1x128xf32>
    %23 = tpu.iota {dimensions = array<i32: 0>} : vector<128x128xi32>
    %24 = tpu.iota {dimensions = array<i32: 1>} : vector<128x128xi32>
    %25 = arith.cmpi slt, %23, %24 : vector<128x128xi32>
    %26 = arith.extui %25 : vector<128x128xi1> to vector<128x128xi32>
    %27 = arith.sitofp %26 : vector<128x128xi32> to vector<128x128xf32>
    %cst_8 = arith.constant dense<0.000000e+00> : vector<1x128xf32>
    %28 = tpu.matmul %22, %27, %cst_8 {dimension_numbers = #tpu.dot_dimension_numbers<[1], [0], [0], [1], [0, 0, 1, 1], [], []>} : vector<1x128xf32>, vector<128x128xf32>, vector<1x128xf32> -> vector<1x128xf32>
    %cst_9 = arith.constant dense<0.000000e+00> : vector<1xf32>
    %29 = vector.multi_reduction <add>, %22, %cst_9 [1] : vector<1x128xf32> to vector<1xf32>
    %30 = vector.shape_cast %29 : vector<1xf32> to vector<1x1xf32>
    %cst_10 = arith.constant 0.000000e+00 : f32
    %31 = vector.broadcast %cst_10 : f32 to vector<1x1xf32>
    %32 = vector.broadcast %31 : vector<1x1xf32> to vector<1x128xf32>
    %33 = arith.addf %28, %32 : vector<1x128xf32>
    %cst_11 = arith.constant dense<0.000000e+00> : vector<1xf32>
    %34 = vector.multi_reduction <add>, %30, %cst_11 [0] : vector<1x1xf32> to vector<1xf32>
    %35 = vector.shape_cast %34 : vector<1xf32> to vector<1x1xf32>
    %36 = arith.sitofp %15 : vector<1x128xi32> to vector<1x128xf32>
    %37 = arith.subf %36, %33 : vector<1x128xf32>
    %38 = vector.broadcast %35 : vector<1x1xf32> to vector<1x128xf32>
    %39 = arith.addf %38, %37 : vector<1x128xf32>
    %40 = arith.select %20, %33, %39 : vector<1x128xi1>, vector<1x128xf32>
    %41 = arith.fptosi %40 : vector<1x128xf32> to vector<1x128xi32>
    %c0_12 = arith.constant 0 : index
    %c0_13 = arith.constant 0 : index
    %42 = vector.load %arg2[%c0_12, %c0_13] : memref<1x128xi32, #tpu.memory_space<vmem>>, vector<1x128xi32>
    tpu.vector_store %arg2[%c0_12, %c0_13], %41 {strides = array<i32>} : memref<1x128xi32, #tpu.memory_space<vmem>>, vector<1x128xi32>,
    %43 = arith.fptosi %35 : vector<1x1xf32> to vector<1x1xi32>
    %c0_14 = arith.constant 0 : index
    %c0_15 = arith.constant 0 : index
    %44 = vector.load %arg3[%c0_14, %c0_15] : memref<1x1xi32, #tpu.memory_space<vmem>>, vector<1x1xi32>
    tpu.vector_store %arg3[%c0_14, %c0_15], %43 {strides = array<i32>} : memref<1x1xi32, #tpu.memory_space<vmem>>, vector<1x1xi32>,
    return
  }
  func.func @transform_0(%arg0: i32) -> (i32, i32, i32) {
    %c0_i32 = arith.constant 0 : i32
    %c0_i32_0 = arith.constant 0 : i32
    %c0_i32_1 = arith.constant 0 : i32
    %c0_i32_2 = arith.constant 0 : i32
    return %c0_i32, %c0_i32_0, %c0_i32_1 : i32, i32, i32
  }
  func.func @transform_1(%arg0: i32) -> (i32, i32) {
    %c0_i32 = arith.constant 0 : i32
    %c0_i32_0 = arith.constant 0 : i32
    %c0_i32_1 = arith.constant 0 : i32
    return %c0_i32, %c0_i32_0 : i32, i32
  }
  func.func @transform_2(%arg0: i32) -> (i32, i32) {
    %c0_i32 = arith.constant 0 : i32
    %c0_i32_0 = arith.constant 0 : i32
    %c0_i32_1 = arith.constant 0 : i32
    return %c0_i32, %c0_i32_0 : i32, i32
  }
}

</mosaic_0001>

<llo_original>
// kernel: remove_invalid_boxes.1
$region0: #{remove_invalid_boxes.1}
  #allocation0 [shape = 'u32[]', space=smem, size = 0x4, offset = 0x4, fixed_abs, tag = 'smem constant byte address 0x4 - core index']
  #allocation1 [shape = 'u32[144,128]{1,0:T(1,128)}', space=vmem, size = 0x12000, scoped, tag = 'internal scratch']
  %s0 = inlined_call_operand.vmem [shape: f32[4,1,128], index: 0, kind: input, shape index: {}]
  %s1 = inlined_call_operand.vmem [shape: s32[1,128], index: 1, kind: output, shape index: {0}]
  %s2 = inlined_call_operand.hbm [shape: s32[1,1], index: 2, kind: output, shape index: {1}]
  %3 = xla_tuple %s1, %s2
  %s4 = sld [smem:[#allocation0]]
  $region22: #{remove_invalid_boxes.1} parent=0
    _
  %s6 = ssub.s32 1, %s4
  %s7 = scalar_select 0, %s6, %s4
  $region1: #{remove_invalid_boxes.1} parent=0
    #allocation2 [shape = 'u8[512]{0}', space=vmem, size = 0x400, scoped, tag = 'output window, operand 1, single buffered']
    #allocation3 [shape = 's32[1]{0}', space=sflag, size = 0x4, scoped, tag = 'scoped memory for remove_invalid_boxes.1']
    %8 = vsyncpa [#allocation3], 0
    // Predicated region
    $region2: #{remove_invalid_boxes.1} parent=1 // pred_check
      _
    $region3: #{remove_invalid_boxes.1} parent=1 // pred_check_branch
      %10 = sbr.rel (0) target = $region5
    $region4: #{remove_invalid_boxes.1} parent=1 // pred_region
      _
    $region5: #{remove_invalid_boxes.1} parent=1 // pred_fallthru
      _
    %v11 = vld [vmem:[%s0] sm:$0x1]
    %s12 = scalar_lea.vmem %s0, 1
    %v13 = vld [vmem:[%s12] sm:$0x1]
    %s14 = scalar_lea.vmem %s0, 2
    %v15 = vld [vmem:[%s14] sm:$0x1]
    %s16 = scalar_lea.vmem %s0, 3
    %v17 = vld [vmem:[%s16] sm:$0x1]
    %v18 = vsub.f32 %v15, %v11
    %v19 = vsub.f32 %v17, %v13
    %v20 = vmul.f32 %v18, %v19
    %v21 = vlaneseq
    %v22 = vshrl.u32 %v21, 7
    %v23 = vlaneseq
    %v24 = vand.u32 %v23, 127
    %v25 = vmul.u32 %v22, 128
    %v26 = vadd.s32 %v25, %v24
    %vm27 = vcmp.gt.f32.partialorder %v20, 1.0
    %vm28 = vcmp.lt.s32.totalorder %v26, 8
    %vm29 = vmand %vm27, %vm28
    %v30 = vsel %vm29, 1, 0
    %v31 = vcvt.s32.f32 %v30
    %v32 = vadd.s32 %v22, 8
    %v33 = vadd.s32 %v22, 16
    %v34 = vadd.s32 %v22, 24
    %v35 = vadd.s32 %v22, 32
    %v36 = vadd.s32 %v22, 40
    %v37 = vadd.s32 %v22, 48
    %v38 = vadd.s32 %v22, 56
    %v39 = vadd.s32 %v22, 64
    %v40 = vadd.s32 %v22, 72
    %v41 = vadd.s32 %v22, 80
    %v42 = vadd.s32 %v22, 88
    %v43 = vadd.s32 %v22, 96
    %v44 = vadd.s32 %v22, 104
    %v45 = vadd.s32 %v22, 112
    %v46 = vadd.s32 %v22, 120
    %vm47 = vcmp.lt.s32.totalorder %v22, %v24
    %vm48 = vcmp.lt.s32.totalorder %v32, %v24
    %vm49 = vcmp.lt.s32.totalorder %v33, %v24
    %vm50 = vcmp.lt.s32.totalorder %v34, %v24
    %vm51 = vcmp.lt.s32.totalorder %v35, %v24
    %vm52 = vcmp.lt.s32.totalorder %v36, %v24
    %vm53 = vcmp.lt.s32.totalorder %v37, %v24
    %vm54 = vcmp.lt.s32.totalorder %v38, %v24
    %vm55 = vcmp.lt.s32.totalorder %v39, %v24
    %vm56 = vcmp.lt.s32.totalorder %v40, %v24
    %vm57 = vcmp.lt.s32.totalorder %v41, %v24
    %vm58 = vcmp.lt.s32.totalorder %v42, %v24
    %vm59 = vcmp.lt.s32.totalorder %v43, %v24
    %vm60 = vcmp.lt.s32.totalorder %v44, %v24
    %vm61 = vcmp.lt.s32.totalorder %v45, %v24
    %vm62 = vcmp.lt.s32.totalorder %v46, %v24
    %v63 = vsel %vm47, 1, 0
    %v64 = vsel %vm48, 1, 0
    %v65 = vsel %vm49, 1, 0
    %v66 = vsel %vm50, 1, 0
    %v67 = vsel %vm51, 1, 0
    %v68 = vsel %vm52, 1, 0
    %v69 = vsel %vm53, 1, 0
    %v70 = vsel %vm54, 1, 0
    %v71 = vsel %vm55, 1, 0
    %v72 = vsel %vm56, 1, 0
    %v73 = vsel %vm57, 1, 0
    %v74 = vsel %vm58, 1, 0
    %v75 = vsel %vm59, 1, 0
    %v76 = vsel %vm60, 1, 0
    %v77 = vsel %vm61, 1, 0
    %v78 = vsel %vm62, 1, 0
    %v79 = vcvt.s32.f32 %v63
    %v80 = vcvt.s32.f32 %v64
    %v81 = vcvt.s32.f32 %v65
    %v82 = vcvt.s32.f32 %v66
    %v83 = vcvt.s32.f32 %v67
    %v84 = vcvt.s32.f32 %v68
    %v85 = vcvt.s32.f32 %v69
    %v86 = vcvt.s32.f32 %v70
    %v87 = vcvt.s32.f32 %v71
    %v88 = vcvt.s32.f32 %v72
    %v89 = vcvt.s32.f32 %v73
    %v90 = vcvt.s32.f32 %v74
    %v91 = vcvt.s32.f32 %v75
    %v92 = vcvt.s32.f32 %v76
    %v93 = vcvt.s32.f32 %v77
    %v94 = vcvt.s32.f32 %v78
    %vm95 = vcmask 1040384
    %v96 = vsel %vm95, %v31, 0.0
    %97 = vadd.xlane.f32.xlu0 %v96
    %v98 = vpop.xlane.xlu0 %97
    %99 = vmatprep.subr.mxu0 0.0
    %100 = vmatpush1.msra.mxu0 %v79
    %101 = vmatprep.subr.mxu0 0.0
    %102 = vmatpush1.msra.mxu0 %v80
    %103 = vmatprep.subr.mxu0 0.0
    %104 = vmatpush1.msra.mxu0 %v81
    %105 = vmatprep.subr.mxu0 0.0
    %106 = vmatpush1.msra.mxu0 %v82
    %107 = vmatprep.subr.mxu0 0.0
    %108 = vmatpush1.msra.mxu0 %v83
    %109 = vmatprep.subr.mxu0 0.0
    %110 = vmatpush1.msra.mxu0 %v84
    %111 = vmatprep.subr.mxu0 0.0
    %112 = vmatpush1.msra.mxu0 %v85
    %113 = vmatprep.subr.mxu0 0.0
    %114 = vmatpush1.msra.mxu0 %v86
    %115 = vmatprep.subr.mxu0 0.0
    %116 = vmatpush1.msra.mxu0 %v87
    %117 = vmatprep.subr.mxu0 0.0
    %118 = vmatpush1.msra.mxu0 %v88
    %119 = vmatprep.subr.mxu0 0.0
    %120 = vmatpush1.msra.mxu0 %v89
    %121 = vmatprep.subr.mxu0 0.0
    %122 = vmatpush1.msra.mxu0 %v90
    %123 = vmatprep.subr.mxu0 0.0
    %124 = vmatpush1.msra.mxu0 %v91
    %125 = vmatprep.subr.mxu0 0.0
    %126 = vmatpush1.msra.mxu0 %v92
    %127 = vmatprep.subr.mxu0 0.0
    %128 = vmatpush1.msra.mxu0 %v93
    %129 = vmatprep.subr.mxu0 0.0
    %130 = vmatpush1.msra.mxu0 %v94
    %131 = vmatprep.subr.mxu0 0.0
    %132 = vmatpush1.msra.mxu0 0.0
    %133 = vmatprep.subr.mxu0 0.0
    %134 = vmatpush1.msra.mxu0 0.0
    %135 = vmatprep.subr.mxu0 0.0
    %136 = vmatpush1.msra.mxu0 0.0
    %137 = vmatprep.subr.mxu0 0.0
    %138 = vmatpush1.msra.mxu0 0.0
    %139 = vmatprep.subr.mxu0 0.0
    %140 = vmatpush1.msra.mxu0 0.0
    %141 = vmatprep.subr.mxu0 0.0
    %142 = vmatpush1.msra.mxu0 0.0
    %143 = vmatprep.subr.mxu0 0.0
    %144 = vmatpush1.msra.mxu0 0.0
    %145 = vmatprep.subr.mxu0 0.0
    %146 = vmatpush1.msra.mxu0 0.0
    %147 = vmatprep.subr.mxu0 0.0
    %148 = vmatpush1.msra.mxu0 0.0
    %149 = vmatprep.subr.mxu0 0.0
    %150 = vmatpush1.msra.mxu0 0.0
    %151 = vmatprep.subr.mxu0 0.0
    %152 = vmatpush1.msra.mxu0 0.0
    %153 = vmatprep.subr.mxu0 0.0
    %154 = vmatpush1.msra.mxu0 0.0
    %155 = vmatprep.subr.mxu0 0.0
    %156 = vmatpush1.msra.mxu0 0.0
    %157 = vmatprep.subr.mxu0 0.0
    %158 = vmatpush1.msra.mxu0 0.0
    %159 = vmatprep.subr.mxu0 0.0
    %160 = vmatpush1.msra.mxu0 0.0
    %161 = vmatprep.subr.mxu0 0.0
    %162 = vmatpush1.msra.mxu0 0.0
    %163 = vmatprep.mubr.f32.mxu0 0.0
    %164 = vmatmul.mubr.f32.gmra.mrb[0].mxu0 %v31
    %v165 = vpop.f32.mrb[0].mxu0
    %v166 = vadd.f32 0.0, %v165
    %v167 = vpop.f32.mrb[0].mxu0
    %168 = vdwg.mxu0
    %v169 = vadd.f32 %v98, 0.0
    %v170 = vcvt.s32.f32 %v26
    %v171 = vsub.f32 %v170, %v166
    %v172 = vadd.f32 %v169, %v171
    %v173 = vsel %vm29, %v166, %v172
    %v174 = vcvt.f32.s32.to.zero.pseudo %v173
    %175 = vst [vmem:[%s1] sm:$0x1] %v174
    %v176 = vcvt.f32.s32.to.zero.pseudo %v169
    %vm177 = vcmask 0
    %178 = vst.msk [vmem:[#allocation2] sm:$0x1] %vm177, %v176
    // Predicated region
    $region6: #{remove_invalid_boxes.1} parent=1 // pred_check
      _
    $region7: #{remove_invalid_boxes.1} parent=1 // pred_check_branch
      %180 = sbr.rel (0) target = $region9
    $region8: #{remove_invalid_boxes.1} parent=1 // pred_region
      _
    $region9: #{remove_invalid_boxes.1} parent=1 // pred_fallthru
      _
    // Predicated region
    $region10: #{remove_invalid_boxes.1} parent=1 // pred_check
      _
    $region11: #{remove_invalid_boxes.1} parent=1 // pred_check_branch
      %182 = sbr.rel (0) target = $region13
    $region12: #{remove_invalid_boxes.1} parent=1 // pred_region
      %s184 = ssub.s32 16, 16
      %185 = vsyncadd [#allocation3], %s184
      %s187 = sshll.u32 [#allocation2], 4
      %s188 = int_to_ptr.vmem [resolvable:$true] %s187
      %190 = dma.vmem_to_hbm [thread:$0]  %s188, 16, %s2, [#allocation3]
    $region13: #{remove_invalid_boxes.1} parent=1 // pred_fallthru
      _
    // Predicated region
    $region14: #{remove_invalid_boxes.1} parent=1 // pred_check
      _
    $region15: #{remove_invalid_boxes.1} parent=1 // pred_check_branch
      %192 = sbr.rel (0) target = $region17
    $region16: #{remove_invalid_boxes.1} parent=1 // pred_region
      _
    $region17: #{remove_invalid_boxes.1} parent=1 // pred_fallthru
      _
    // Predicated region
    $region18: #{remove_invalid_boxes.1} parent=1 // pred_check
      _
    $region19: #{remove_invalid_boxes.1} parent=1 // pred_check_branch
      %194 = sbr.rel (0) target = $region21
    $region20: #{remove_invalid_boxes.1} parent=1 // pred_region
      %195 = dma.done [#allocation3], 16
    $region21: #{remove_invalid_boxes.1} parent=1 // pred_fallthru
      _
    %196 = vsyncpa [#allocation3], 1

</llo_original>
